<compile_context>
chip_gen: v6e
topology: v6e:2x2x1
jax: 0.10.0
libtpu: 0.0.40
codegen_flags: <defaults>
</compile_context>

<pallas_src>
import jax
import jax.numpy as jnp
from jax.experimental import pallas as pl
from jax.experimental.pallas import tpu as pltpu


def _sigmoid_mul_kernel(x_ref, g_ref, o_ref):
    # g_ref: (rows, 1)  -> sigmoid on EUP, broadcast against (rows, lanes) x tile.
    g = jax.nn.sigmoid(g_ref[...].astype(jnp.float32))          # (rows, 1)
    o_ref[...] = (x_ref[...].astype(jnp.float32) * g).astype(o_ref.dtype)


def sigmoid_mul(gate, x, *, block_rows=512):
    """Computes sigmoid(gate) * x with gate (N,C,1,1) broadcast over (N,C,H,W)."""
    N, C, H, W = x.shape
    NC = N * C
    HW = H * W

    xf = x.reshape(NC, HW)
    gf = gate.reshape(NC, 1)

    # Pad lane axis (spatial) to a multiple of 128 -> unmasked, lane-dense stores.
    HW_pad = max(128, ((HW + 127) // 128) * 128)
    if HW_pad != HW:
        xf = jnp.pad(xf, ((0, 0), (0, HW_pad - HW)))

    # Row tile: multiple of 8 sublanes, capped by problem size; keep the tile
    # comfortably inside per-generation VMEM (512x128 f32 = 256 KiB, fine on
    # v5e/v6e/v7x with double-buffering).
    block_rows = max(8, min(block_rows, ((NC + 7) // 8) * 8))
    block_rows = (block_rows // 8) * 8

    NC_pad = ((NC + block_rows - 1) // block_rows) * block_rows
    if NC_pad != NC:
        xf = jnp.pad(xf, ((0, NC_pad - NC), (0, 0)))
        gf = jnp.pad(gf, ((0, NC_pad - NC), (0, 0)))

    grid = (NC_pad // block_rows,)

    out = pl.pallas_call(
        _sigmoid_mul_kernel,
        out_shape=jax.ShapeDtypeStruct((NC_pad, HW_pad), x.dtype),
        grid_spec=pl.GridSpec(
            grid=grid,
            in_specs=[
                pl.BlockSpec((block_rows, HW_pad), lambda i: (i, 0)),  # x tile
                pl.BlockSpec((block_rows, 1), lambda i: (i, 0)),       # gate col
            ],
            out_specs=pl.BlockSpec((block_rows, HW_pad), lambda i: (i, 0)),
        ),
        compiler_params=pltpu.CompilerParams(
            dimension_semantics=("parallel",),
        ),
    )(xf, gf)

    return out[:NC, :HW].reshape(N, C, H, W)


if __name__ == "__main__":
    # Shapes from the PyTorch module: x385 (1,1536,7,7), x389 (1,1536,1,1)
    key = jax.random.PRNGKey(0)
    k1, k2 = jax.random.split(key)
    x385 = jax.random.normal(k1, (1, 1536, 7, 7), dtype=jnp.float32)
    x389 = jax.random.normal(k2, (1, 1536, 1, 1), dtype=jnp.float32)

    out = sigmoid_mul(x389, x385)
    out = jax.block_until_ready(out)

    # Reference check (pure JAX)
    ref = jax.nn.sigmoid(x389) * x385
    assert out.shape == ref.shape
    assert jnp.allclose(out, ref, atol=1e-5, rtol=1e-5), "mismatch vs reference"

    print("KERNEL_OK")
</pallas_src>

<mosaic_0001>
module attributes {stable_mosaic.version = 11 : i64} {
  func.func @_sigmoid_mul_kernel(%arg0: i32, %arg1: memref<512x128xf32, #tpu.memory_space<vmem>>, %arg2: memref<512x1xf32, #tpu.memory_space<vmem>>, %arg3: memref<512x128xf32, #tpu.memory_space<vmem>>) attributes {dimension_semantics = [#tpu.dimension_semantics<parallel>], iteration_bounds = array<i64: 3>, scalar_prefetch = 0 : i64, scratch_operands = 0 : i64, tpu.core_type = #tpu.core_type<tc>, window_params = [{transform_indices = @transform_0, window_bounds = array<i64: 512, 128>}, {transform_indices = @transform_1, window_bounds = array<i64: 512, 1>}, {transform_indices = @transform_2, window_bounds = array<i64: 512, 128>}]} {
    %c0 = arith.constant 0 : index
    %c0_0 = arith.constant 0 : index
    %0 = vector.load %arg2[%c0, %c0_0] : memref<512x1xf32, #tpu.memory_space<vmem>>, vector<512x1xf32>
    %1 = arith.negf %0 : vector<512x1xf32>
    %2 = math.exp %1 : vector<512x1xf32>
    %cst = arith.constant 1.000000e+00 : f32
    %3 = vector.broadcast %cst : f32 to vector<512x1xf32>
    %4 = arith.addf %3, %2 : vector<512x1xf32>
    %5 = arith.divf %3, %4 : vector<512x1xf32>
    %c0_1 = arith.constant 0 : index
    %c0_2 = arith.constant 0 : index
    %6 = vector.load %arg1[%c0_1, %c0_2] : memref<512x128xf32, #tpu.memory_space<vmem>>, vector<512x128xf32>
    %7 = vector.broadcast %5 : vector<512x1xf32> to vector<512x128xf32>
    %8 = arith.mulf %6, %7 : vector<512x128xf32>
    %c0_3 = arith.constant 0 : index
    %c0_4 = arith.constant 0 : index
    %9 = vector.load %arg3[%c0_3, %c0_4] : memref<512x128xf32, #tpu.memory_space<vmem>>, vector<512x128xf32>
    tpu.vector_store %arg3[%c0_3, %c0_4], %8 {strides = array<i32>} : memref<512x128xf32, #tpu.memory_space<vmem>>, vector<512x128xf32>,
    return
  }
  func.func @transform_0(%arg0: i32) -> (i32, i32) {
    %c0_i32 = arith.constant 0 : i32
    %c0_i32_0 = arith.constant 0 : i32
    return %arg0, %c0_i32 : i32, i32
  }
  func.func @transform_1(%arg0: i32) -> (i32, i32) {
    %c0_i32 = arith.constant 0 : i32
    %c0_i32_0 = arith.constant 0 : i32
    return %arg0, %c0_i32 : i32, i32
  }
  func.func @transform_2(%arg0: i32) -> (i32, i32) {
    %c0_i32 = arith.constant 0 : i32
    %c0_i32_0 = arith.constant 0 : i32
    return %arg0, %c0_i32 : i32, i32
  }
}

</mosaic_0001>

<llo_original>
// kernel: tpu_custom_call.1
$region0: #{tpu_custom_call.1}
  #allocation0 [shape = 'u32[]', space=smem, size = 0x4, offset = 0x4, fixed_abs, tag = 'smem constant byte address 0x4 - core index']
  #allocation1 [shape = 'u32[144,128]{1,0:T(1,128)}', space=vmem, size = 0x12000, scoped, tag = 'internal scratch']
  %s0 = inlined_call_operand.vmem [shape: f32[1536,128], index: 0, kind: input, shape index: {}]
  %s1 = inlined_call_operand.vmem [shape: f32[1536,1], index: 1, kind: input, shape index: {}]
  %s2 = inlined_call_operand.hbm [shape: f32[1536,128], index: 2, kind: output, shape index: {}]
  %s3 = sld [smem:[#allocation0]]
  $region41: #{tpu_custom_call.1} parent=0
    _
  %s5 = ssub.s32 1, %s3
  %s6 = scalar_select 0, %s5, %s3
  $region1: #{tpu_custom_call.1} parent=0
    #allocation2 [shape = 'u8[524288]{0}', space=vmem, size = 0x80000, scoped, tag = 'output window, operand 0']
    #allocation3 [shape = 's32[2]{0}', space=sflag, size = 0x8, scoped, tag = 'scoped memory for tpu_custom_call.1']
    %7 = vsyncpa [#allocation3], 0
    %s8 = scalar_lea.sflag [#allocation3], 1
    %9 = vsyncpa %s8, 0
    loop: start=0, step=1, limit=5
    $region2: #{tpu_custom_call.1} parent=1 // loop_pre_header
      _
    $region3: #{tpu_custom_call.1} parent=1 // loop_header
      %s11 = sphi 0, %s15
      %p12 = scmp.ge.s32.totalorder %s11, 5
      %s21 = sphi 0, %s23
      %s24 = sphi 0, %s21
      %s25 = sphi 0, %s24
      %s41 = sphi 0, %s25
      %s47 = sphi 0, %s49
      %s50 = sphi 0, %s47
      %s51 = sphi 0, %s50
      %s67 = sphi 0, %s51
      %s73 = sphi 0, %s75
      %s76 = sphi 0, %s73
      %s77 = sphi 0, %s76
      %s93 = sphi 0, %s77
    $region4: #{tpu_custom_call.1} parent=1 // loop_header_branch
      %14 = sbr.rel (%p12) target = $region8
    $region5: #{tpu_custom_call.1} parent=1 // loop_body
      %s16 = ssub.s32 %s11, 1
      %s17 = ssub.s32 %s11, 2
      %s18 = sadd.s32 %s11, 1
      %s19 = ssub.s32 %s11, %s18
      %p20 = scmp.eq.s32.totalorder %s19, 0
      %s22 = sadd.s32 %s21, 1
      %s23 = scalar_select %p20, %s21, %s22
      %p26 = pneg %p20
      %p27 = scmp.eq.s32.totalorder %s11, 2
      %p28 = por %p26, %p27
      %p29 = scmp.ne.s32.totalorder %s21, %s24
      %p30 = scmp.eq.s32.totalorder %s11, 0
      %p31 = por %p29, %p30
      %p32 = scmp.ne.s32.totalorder %s21, %s24
      %p33 = scmp.eq.s32.totalorder %s16, 2
      %p34 = por %p32, %p33
      %p35 = scmp.ne.s32.totalorder %s24, %s25
      %p36 = scmp.eq.s32.totalorder %s16, 0
      %p37 = por %p35, %p36
      %p38 = scmp.ne.s32.totalorder %s24, %s25
      %p39 = scmp.eq.s32.totalorder %s17, 2
      %p40 = por %p38, %p39
      %p42 = scmp.ne.s32.totalorder %s25, %s41
      %p43 = scmp.eq.s32.totalorder %s17, 0
      %p44 = por %p42, %p43
      %s45 = ssub.s32 %s11, %s18
      %p46 = scmp.eq.s32.totalorder %s45, 0
      %s48 = sadd.s32 %s47, 1
      %s49 = scalar_select %p46, %s47, %s48
      %p52 = pneg %p46
      %p53 = scmp.eq.s32.totalorder %s11, 2
      %p54 = por %p52, %p53
      %p55 = scmp.ne.s32.totalorder %s47, %s50
      %p56 = scmp.eq.s32.totalorder %s11, 0
      %p57 = por %p55, %p56
      %p58 = scmp.ne.s32.totalorder %s47, %s50
      %p59 = scmp.eq.s32.totalorder %s16, 2
      %p60 = por %p58, %p59
      %p61 = scmp.ne.s32.totalorder %s50, %s51
      %p62 = scmp.eq.s32.totalorder %s16, 0
      %p63 = por %p61, %p62
      %p64 = scmp.ne.s32.totalorder %s50, %s51
      %p65 = scmp.eq.s32.totalorder %s17, 2
      %p66 = por %p64, %p65
      %p68 = scmp.ne.s32.totalorder %s51, %s67
      %p69 = scmp.eq.s32.totalorder %s17, 0
      %p70 = por %p68, %p69
      %s71 = ssub.s32 %s11, %s18
      %p72 = scmp.eq.s32.totalorder %s71, 0
      %s74 = sadd.s32 %s73, 1
      %s75 = scalar_select %p72, %s73, %s74
      %p78 = pneg %p72
      %p79 = scmp.eq.s32.totalorder %s11, 2
      %p80 = por %p78, %p79
      %p81 = scmp.ne.s32.totalorder %s73, %s76
      %p82 = scmp.eq.s32.totalorder %s11, 0
      %p83 = por %p81, %p82
      %p84 = scmp.ne.s32.totalorder %s73, %s76
      %p85 = scmp.eq.s32.totalorder %s16, 2
      %p86 = por %p84, %p85
      %p87 = scmp.ne.s32.totalorder %s76, %s77
      %p88 = scmp.eq.s32.totalorder %s16, 0
      %p89 = por %p87, %p88
      %p90 = scmp.ne.s32.totalorder %s76, %s77
      %p91 = scmp.eq.s32.totalorder %s17, 2
      %p92 = por %p90, %p91
      %p94 = scmp.ne.s32.totalorder %s77, %s93
      %p95 = scmp.eq.s32.totalorder %s17, 0
      %p96 = por %p94, %p95
      %p97 = scmp.le.s32.totalorder 1, %s11
      %p98 = scmp.lt.s32.totalorder %s11, 4
      %p99 = pnand %p97, %p98
      %p100 = pneg %p99
      // Predicated region
      $region9: #{tpu_custom_call.1} parent=5 // pred_check
        _
      $region10: #{tpu_custom_call.1} parent=5 // pred_check_branch
        %102 = sbr.rel (%p99) target = $region12
      $region11: #{tpu_custom_call.1} parent=5 // pred_region
        %s103 = ssub.s32 %s11, 1
      $region12: #{tpu_custom_call.1} parent=5 // pred_fallthru
        _
      %p104 = scmp.lt.s32.totalorder %s11, 3
      // Predicated region
      $region13: #{tpu_custom_call.1} parent=5 // pred_check
        %p105 = pneg %p104
      $region14: #{tpu_custom_call.1} parent=5 // pred_check_branch
        %107 = sbr.rel (%p105) target = $region16
      $region15: #{tpu_custom_call.1} parent=5 // pred_region
        // Predicated region
        $region17: #{tpu_custom_call.1} parent=15 // pred_check
          %p108 = pneg %p31
        $region18: #{tpu_custom_call.1} parent=15 // pred_check_branch
          %110 = sbr.rel (%p108) target = $region20
        $region19: #{tpu_custom_call.1} parent=15 // pred_region
          %s111 = smul.u32 64, %s11
          %p112 = scmp.lt.s32.totalorder %s111, 191
          %s113 = scalar_select %p112, %s111, 191
          %s114 = smul.addr %s113, 8
          %s115 = scalar_lea.vmem %s0, %s114
          %s116 = smul.u32 64, %s11
        $region20: #{tpu_custom_call.1} parent=15 // pred_fallthru
          _
        // Predicated region
        $region21: #{tpu_custom_call.1} parent=15 // pred_check
          %p117 = pneg %p57
        $region22: #{tpu_custom_call.1} parent=15 // pred_check_branch
          %119 = sbr.rel (%p117) target = $region24
        $region23: #{tpu_custom_call.1} parent=15 // pred_region
          %s120 = smul.u32 64, %s11
          %p121 = scmp.lt.s32.totalorder %s120, 191
          %s122 = scalar_select %p121, %s120, 191
          %s123 = smul.addr %s122, 8
          %s124 = scalar_lea.vmem %s1, %s123
          %s125 = smul.u32 64, %s11
        $region24: #{tpu_custom_call.1} parent=15 // pred_fallthru
          _
      $region16: #{tpu_custom_call.1} parent=5 // pred_fallthru
        _
      %p126 = scmp.le.s32.totalorder 1, %s11
      %p127 = scmp.lt.s32.totalorder %s11, 4
      %p128 = pnand %p126, %p127
      %p129 = pneg %p128
      // Predicated region
      $region25: #{tpu_custom_call.1} parent=5 // pred_check
        _
      $region26: #{tpu_custom_call.1} parent=5 // pred_check_branch
        %131 = sbr.rel (%p128) target = $region28
      $region27: #{tpu_custom_call.1} parent=5 // pred_region
        %s132 = ssub.s32 %s11, 1
        %s133 = smul.u32 64, %s16
        %p134 = scmp.lt.s32.totalorder %s133, 191
        %s135 = scalar_select %p134, %s133, 191
        %s136 = smul.addr %s135, 8
        %s137 = scalar_lea.vmem %s0, %s136
        %p138 = pneg %p37
        %p139 = pneg %p34
        %s140 = smul.u32 64, %s16
        %p141 = scmp.lt.s32.totalorder %s140, 191
        %s142 = scalar_select %p141, %s140, 191
        %s143 = smul.addr %s142, 8
        %s144 = scalar_lea.vmem %s1, %s143
        %p145 = pneg %p63
        %p146 = pneg %p60
        %p147 = pneg %p89
        %p148 = pneg %p86
        %s149 = sand.u32 %s76, 1
        %s150 = scalar_lea.sflag [#allocation3], %s149
        %s151 = sand.u32 %s76, 1
        %s152 = smul.addr %s151, 512
        %s153 = scalar_lea.vmem [#allocation2], %s152
        %s154 = smul.u32 64, %s16
        %p155 = scmp.lt.s32.totalorder %s154, 191
        %s156 = scalar_select %p155, %s154, 191
        %s157 = smul.addr %s156, 8
        %s158 = scalar_lea.vmem %s0, %s157
        %s159 = smul.u32 64, %s16
        %s160 = smul.u32 64, %s16
        %p161 = scmp.lt.s32.totalorder %s160, 191
        %s162 = scalar_select %p161, %s160, 191
        %s163 = smul.addr %s162, 8
        %s164 = scalar_lea.vmem %s1, %s163
        %s165 = smul.u32 64, %s16
        %s166 = smul.u32 64, %s16
        %v167 = vld [vmem:[%s164] sm:$0xff]
        %v168 = vld [vmem:[%s164 + $0x8] sm:$0xff]
        %v169 = vld [vmem:[%s164 + $0x10] sm:$0xff]
        %v170 = vld [vmem:[%s164 + $0x18] sm:$0xff]
        %v171 = vld [vmem:[%s164 + $0x20] sm:$0xff]
        %v172 = vld [vmem:[%s164 + $0x28] sm:$0xff]
        %v173 = vld [vmem:[%s164 + $0x30] sm:$0xff]
        %v174 = vld [vmem:[%s164 + $0x38] sm:$0xff]
        %v175 = vld [vmem:[%s164 + $0x40] sm:$0xff]
        %v176 = vld [vmem:[%s164 + $0x48] sm:$0xff]
        %v177 = vld [vmem:[%s164 + $0x50] sm:$0xff]
        %v178 = vld [vmem:[%s164 + $0x58] sm:$0xff]
        %v179 = vld [vmem:[%s164 + $0x60] sm:$0xff]
        %v180 = vld [vmem:[%s164 + $0x68] sm:$0xff]
        %v181 = vld [vmem:[%s164 + $0x70] sm:$0xff]
        %v182 = vld [vmem:[%s164 + $0x78] sm:$0xff]
        %v183 = vld [vmem:[%s164 + $0x80] sm:$0xff]
        %v184 = vld [vmem:[%s164 + $0x88] sm:$0xff]
        %v185 = vld [vmem:[%s164 + $0x90] sm:$0xff]
        %v186 = vld [vmem:[%s164 + $0x98] sm:$0xff]
        %v187 = vld [vmem:[%s164 + $0xa0] sm:$0xff]
        %v188 = vld [vmem:[%s164 + $0xa8] sm:$0xff]
        %v189 = vld [vmem:[%s164 + $0xb0] sm:$0xff]
        %v190 = vld [vmem:[%s164 + $0xb8] sm:$0xff]
        %v191 = vld [vmem:[%s164 + $0xc0] sm:$0xff]
        %v192 = vld [vmem:[%s164 + $0xc8] sm:$0xff]
        %v193 = vld [vmem:[%s164 + $0xd0] sm:$0xff]
        %v194 = vld [vmem:[%s164 + $0xd8] sm:$0xff]
        %v195 = vld [vmem:[%s164 + $0xe0] sm:$0xff]
        %v196 = vld [vmem:[%s164 + $0xe8] sm:$0xff]
        %v197 = vld [vmem:[%s164 + $0xf0] sm:$0xff]
        %v198 = vld [vmem:[%s164 + $0xf8] sm:$0xff]
        %v199 = vld [vmem:[%s164 + $0x100] sm:$0xff]
        %v200 = vld [vmem:[%s164 + $0x108] sm:$0xff]
        %v201 = vld [vmem:[%s164 + $0x110] sm:$0xff]
        %v202 = vld [vmem:[%s164 + $0x118] sm:$0xff]
        %v203 = vld [vmem:[%s164 + $0x120] sm:$0xff]
        %v204 = vld [vmem:[%s164 + $0x128] sm:$0xff]
        %v205 = vld [vmem:[%s164 + $0x130] sm:$0xff]
        %v206 = vld [vmem:[%s164 + $0x138] sm:$0xff]
        %v207 = vld [vmem:[%s164 + $0x140] sm:$0xff]
        %v208 = vld [vmem:[%s164 + $0x148] sm:$0xff]
        %v209 = vld [vmem:[%s164 + $0x150] sm:$0xff]
        %v210 = vld [vmem:[%s164 + $0x158] sm:$0xff]
        %v211 = vld [vmem:[%s164 + $0x160] sm:$0xff]
        %v212 = vld [vmem:[%s164 + $0x168] sm:$0xff]
        %v213 = vld [vmem:[%s164 + $0x170] sm:$0xff]
        %v214 = vld [vmem:[%s164 + $0x178] sm:$0xff]
        %v215 = vld [vmem:[%s164 + $0x180] sm:$0xff]
        %v216 = vld [vmem:[%s164 + $0x188] sm:$0xff]
        %v217 = vld [vmem:[%s164 + $0x190] sm:$0xff]
        %v218 = vld [vmem:[%s164 + $0x198] sm:$0xff]
        %v219 = vld [vmem:[%s164 + $0x1a0] sm:$0xff]
        %v220 = vld [vmem:[%s164 + $0x1a8] sm:$0xff]
        %v221 = vld [vmem:[%s164 + $0x1b0] sm:$0xff]
        %v222 = vld [vmem:[%s164 + $0x1b8] sm:$0xff]
        %v223 = vld [vmem:[%s164 + $0x1c0] sm:$0xff]
        %v224 = vld [vmem:[%s164 + $0x1c8] sm:$0xff]
        %v225 = vld [vmem:[%s164 + $0x1d0] sm:$0xff]
        %v226 = vld [vmem:[%s164 + $0x1d8] sm:$0xff]
        %v227 = vld [vmem:[%s164 + $0x1e0] sm:$0xff]
        %v228 = vld [vmem:[%s164 + $0x1e8] sm:$0xff]
        %v229 = vld [vmem:[%s164 + $0x1f0] sm:$0xff]
        %v230 = vld [vmem:[%s164 + $0x1f8] sm:$0xff]
        %v231 = vxor.u32 %v167, 2147483648
        %v232 = vxor.u32 %v168, 2147483648
        %v233 = vxor.u32 %v169, 2147483648
        %v234 = vxor.u32 %v170, 2147483648
        %v235 = vxor.u32 %v171, 2147483648
        %v236 = vxor.u32 %v172, 2147483648
        %v237 = vxor.u32 %v173, 2147483648
        %v238 = vxor.u32 %v174, 2147483648
        %v239 = vxor.u32 %v175, 2147483648
        %v240 = vxor.u32 %v176, 2147483648
        %v241 = vxor.u32 %v177, 2147483648
        %v242 = vxor.u32 %v178, 2147483648
        %v243 = vxor.u32 %v179, 2147483648
        %v244 = vxor.u32 %v180, 2147483648
        %v245 = vxor.u32 %v181, 2147483648
        %v246 = vxor.u32 %v182, 2147483648
        %v247 = vxor.u32 %v183, 2147483648
        %v248 = vxor.u32 %v184, 2147483648
        %v249 = vxor.u32 %v185, 2147483648
        %v250 = vxor.u32 %v186, 2147483648
        %v251 = vxor.u32 %v187, 2147483648
        %v252 = vxor.u32 %v188, 2147483648
        %v253 = vxor.u32 %v189, 2147483648
        %v254 = vxor.u32 %v190, 2147483648
        %v255 = vxor.u32 %v191, 2147483648
        %v256 = vxor.u32 %v192, 2147483648
        %v257 = vxor.u32 %v193, 2147483648
        %v258 = vxor.u32 %v194, 2147483648
        %v259 = vxor.u32 %v195, 2147483648
        %v260 = vxor.u32 %v196, 2147483648
        %v261 = vxor.u32 %v197, 2147483648
        %v262 = vxor.u32 %v198, 2147483648
        %v263 = vxor.u32 %v199, 2147483648
        %v264 = vxor.u32 %v200, 2147483648
        %v265 = vxor.u32 %v201, 2147483648
        %v266 = vxor.u32 %v202, 2147483648
        %v267 = vxor.u32 %v203, 2147483648
        %v268 = vxor.u32 %v204, 2147483648
        %v269 = vxor.u32 %v205, 2147483648
        %v270 = vxor.u32 %v206, 2147483648
        %v271 = vxor.u32 %v207, 2147483648
        %v272 = vxor.u32 %v208, 2147483648
        %v273 = vxor.u32 %v209, 2147483648
        %v274 = vxor.u32 %v210, 2147483648
        %v275 = vxor.u32 %v211, 2147483648
        %v276 = vxor.u32 %v212, 2147483648
        %v277 = vxor.u32 %v213, 2147483648
        %v278 = vxor.u32 %v214, 2147483648
        %v279 = vxor.u32 %v215, 2147483648
        %v280 = vxor.u32 %v216, 2147483648
        %v281 = vxor.u32 %v217, 2147483648
        %v282 = vxor.u32 %v218, 2147483648
        %v283 = vxor.u32 %v219, 2147483648
        %v284 = vxor.u32 %v220, 2147483648
        %v285 = vxor.u32 %v221, 2147483648
        %v286 = vxor.u32 %v222, 2147483648
        %v287 = vxor.u32 %v223, 2147483648
        %v288 = vxor.u32 %v224, 2147483648
        %v289 = vxor.u32 %v225, 2147483648
        %v290 = vxor.u32 %v226, 2147483648
        %v291 = vxor.u32 %v227, 2147483648
        %v292 = vxor.u32 %v228, 2147483648
        %v293 = vxor.u32 %v229, 2147483648
        %v294 = vxor.u32 %v230, 2147483648
        %v295 = vmul.f32 %v231, 1.442695
        %v296 = vpow.pop %v295
        %v297 = vmul.f32 %v232, 1.442695
        %v298 = vpow.pop %v297
        %v299 = vmul.f32 %v233, 1.442695
        %v300 = vpow.pop %v299
        %v301 = vmul.f32 %v234, 1.442695
        %v302 = vpow.pop %v301
        %v303 = vmul.f32 %v235, 1.442695
        %v304 = vpow.pop %v303
        %v305 = vmul.f32 %v236, 1.442695
        %v306 = vpow.pop %v305
        %v307 = vmul.f32 %v237, 1.442695
        %v308 = vpow.pop %v307
        %v309 = vmul.f32 %v238, 1.442695
        %v310 = vpow.pop %v309
        %v311 = vmul.f32 %v239, 1.442695
        %v312 = vpow.pop %v311
        %v313 = vmul.f32 %v240, 1.442695
        %v314 = vpow.pop %v313
        %v315 = vmul.f32 %v241, 1.442695
        %v316 = vpow.pop %v315
        %v317 = vmul.f32 %v242, 1.442695
        %v318 = vpow.pop %v317
        %v319 = vmul.f32 %v243, 1.442695
        %v320 = vpow.pop %v319
        %v321 = vmul.f32 %v244, 1.442695
        %v322 = vpow.pop %v321
        %v323 = vmul.f32 %v245, 1.442695
        %v324 = vpow.pop %v323
        %v325 = vmul.f32 %v246, 1.442695
        %v326 = vpow.pop %v325
        %v327 = vmul.f32 %v247, 1.442695
        %v328 = vpow.pop %v327
        %v329 = vmul.f32 %v248, 1.442695
        %v330 = vpow.pop %v329
        %v331 = vmul.f32 %v249, 1.442695
        %v332 = vpow.pop %v331
        %v333 = vmul.f32 %v250, 1.442695
        %v334 = vpow.pop %v333
        %v335 = vmul.f32 %v251, 1.442695
        %v336 = vpow.pop %v335
        %v337 = vmul.f32 %v252, 1.442695
        %v338 = vpow.pop %v337
        %v339 = vmul.f32 %v253, 1.442695
        %v340 = vpow.pop %v339
        %v341 = vmul.f32 %v254, 1.442695
        %v342 = vpow.pop %v341
        %v343 = vmul.f32 %v255, 1.442695
        %v344 = vpow.pop %v343
        %v345 = vmul.f32 %v256, 1.442695
        %v346 = vpow.pop %v345
        %v347 = vmul.f32 %v257, 1.442695
        %v348 = vpow.pop %v347
        %v349 = vmul.f32 %v258, 1.442695
        %v350 = vpow.pop %v349
        %v351 = vmul.f32 %v259, 1.442695
        %v352 = vpow.pop %v351
        %v353 = vmul.f32 %v260, 1.442695
        %v354 = vpow.pop %v353
        %v355 = vmul.f32 %v261, 1.442695
        %v356 = vpow.pop %v355
        %v357 = vmul.f32 %v262, 1.442695
        %v358 = vpow.pop %v357
        %v359 = vmul.f32 %v263, 1.442695
        %v360 = vpow.pop %v359
        %v361 = vmul.f32 %v264, 1.442695
        %v362 = vpow.pop %v361
        %v363 = vmul.f32 %v265, 1.442695
        %v364 = vpow.pop %v363
        %v365 = vmul.f32 %v266, 1.442695
        %v366 = vpow.pop %v365
        %v367 = vmul.f32 %v267, 1.442695
        %v368 = vpow.pop %v367
        %v369 = vmul.f32 %v268, 1.442695
        %v370 = vpow.pop %v369
        %v371 = vmul.f32 %v269, 1.442695
        %v372 = vpow.pop %v371
        %v373 = vmul.f32 %v270, 1.442695
        %v374 = vpow.pop %v373
        %v375 = vmul.f32 %v271, 1.442695
        %v376 = vpow.pop %v375
        %v377 = vmul.f32 %v272, 1.442695
        %v378 = vpow.pop %v377
        %v379 = vmul.f32 %v273, 1.442695
        %v380 = vpow.pop %v379
        %v381 = vmul.f32 %v274, 1.442695
        %v382 = vpow.pop %v381
        %v383 = vmul.f32 %v275, 1.442695
        %v384 = vpow.pop %v383
        %v385 = vmul.f32 %v276, 1.442695
        %v386 = vpow.pop %v385
        %v387 = vmul.f32 %v277, 1.442695
        %v388 = vpow.pop %v387
        %v389 = vmul.f32 %v278, 1.442695
        %v390 = vpow.pop %v389
        %v391 = vmul.f32 %v279, 1.442695
        %v392 = vpow.pop %v391
        %v393 = vmul.f32 %v280, 1.442695
        %v394 = vpow.pop %v393
        %v395 = vmul.f32 %v281, 1.442695
        %v396 = vpow.pop %v395
        %v397 = vmul.f32 %v282, 1.442695
        %v398 = vpow.pop %v397
        %v399 = vmul.f32 %v283, 1.442695
        %v400 = vpow.pop %v399
        %v401 = vmul.f32 %v284, 1.442695
        %v402 = vpow.pop %v401
        %v403 = vmul.f32 %v285, 1.442695
        %v404 = vpow.pop %v403
        %v405 = vmul.f32 %v286, 1.442695
        %v406 = vpow.pop %v405
        %v407 = vmul.f32 %v287, 1.442695
        %v408 = vpow.pop %v407
        %v409 = vmul.f32 %v288, 1.442695
        %v410 = vpow.pop %v409
        %v411 = vmul.f32 %v289, 1.442695
        %v412 = vpow.pop %v411
        %v413 = vmul.f32 %v290, 1.442695
        %v414 = vpow.pop %v413
        %v415 = vmul.f32 %v291, 1.442695
        %v416 = vpow.pop %v415
        %v417 = vmul.f32 %v292, 1.442695
        %v418 = vpow.pop %v417
        %v419 = vmul.f32 %v293, 1.442695
        %v420 = vpow.pop %v419
        %v421 = vmul.f32 %v294, 1.442695
        %v422 = vpow.pop %v421
        %v423 = vadd.f32 %v296, 1.0
        %v424 = vadd.f32 %v298, 1.0
        %v425 = vadd.f32 %v300, 1.0
        %v426 = vadd.f32 %v302, 1.0
        %v427 = vadd.f32 %v304, 1.0
        %v428 = vadd.f32 %v306, 1.0
        %v429 = vadd.f32 %v308, 1.0
        %v430 = vadd.f32 %v310, 1.0
        %v431 = vadd.f32 %v312, 1.0
        %v432 = vadd.f32 %v314, 1.0
        %v433 = vadd.f32 %v316, 1.0
        %v434 = vadd.f32 %v318, 1.0
        %v435 = vadd.f32 %v320, 1.0
        %v436 = vadd.f32 %v322, 1.0
        %v437 = vadd.f32 %v324, 1.0
        %v438 = vadd.f32 %v326, 1.0
        %v439 = vadd.f32 %v328, 1.0
        %v440 = vadd.f32 %v330, 1.0
        %v441 = vadd.f32 %v332, 1.0
        %v442 = vadd.f32 %v334, 1.0
        %v443 = vadd.f32 %v336, 1.0
        %v444 = vadd.f32 %v338, 1.0
        %v445 = vadd.f32 %v340, 1.0
        %v446 = vadd.f32 %v342, 1.0
        %v447 = vadd.f32 %v344, 1.0
        %v448 = vadd.f32 %v346, 1.0
        %v449 = vadd.f32 %v348, 1.0
        %v450 = vadd.f32 %v350, 1.0
        %v451 = vadd.f32 %v352, 1.0
        %v452 = vadd.f32 %v354, 1.0
        %v453 = vadd.f32 %v356, 1.0
        %v454 = vadd.f32 %v358, 1.0
        %v455 = vadd.f32 %v360, 1.0
        %v456 = vadd.f32 %v362, 1.0
        %v457 = vadd.f32 %v364, 1.0
        %v458 = vadd.f32 %v366, 1.0
        %v459 = vadd.f32 %v368, 1.0
        %v460 = vadd.f32 %v370, 1.0
        %v461 = vadd.f32 %v372, 1.0
        %v462 = vadd.f32 %v374, 1.0
        %v463 = vadd.f32 %v376, 1.0
        %v464 = vadd.f32 %v378, 1.0
        %v465 = vadd.f32 %v380, 1.0
        %v466 = vadd.f32 %v382, 1.0
        %v467 = vadd.f32 %v384, 1.0
        %v468 = vadd.f32 %v386, 1.0
        %v469 = vadd.f32 %v388, 1.0
        %v470 = vadd.f32 %v390, 1.0
        %v471 = vadd.f32 %v392, 1.0
        %v472 = vadd.f32 %v394, 1.0
        %v473 = vadd.f32 %v396, 1.0
        %v474 = vadd.f32 %v398, 1.0
        %v475 = vadd.f32 %v400, 1.0
        %v476 = vadd.f32 %v402, 1.0
        %v477 = vadd.f32 %v404, 1.0
        %v478 = vadd.f32 %v406, 1.0
        %v479 = vadd.f32 %v408, 1.0
        %v480 = vadd.f32 %v410, 1.0
        %v481 = vadd.f32 %v412, 1.0
        %v482 = vadd.f32 %v414, 1.0
        %v483 = vadd.f32 %v416, 1.0
        %v484 = vadd.f32 %v418, 1.0
        %v485 = vadd.f32 %v420, 1.0
        %v486 = vadd.f32 %v422, 1.0
        %v487 = vrcp.pop %v423
        %v488 = vmul.f32 1.0, %v487
        %v489 = vrcp.pop %v424
        %v490 = vmul.f32 1.0, %v489
        %v491 = vrcp.pop %v425
        %v492 = vmul.f32 1.0, %v491
        %v493 = vrcp.pop %v426
        %v494 = vmul.f32 1.0, %v493
        %v495 = vrcp.pop %v427
        %v496 = vmul.f32 1.0, %v495
        %v497 = vrcp.pop %v428
        %v498 = vmul.f32 1.0, %v497
        %v499 = vrcp.pop %v429
        %v500 = vmul.f32 1.0, %v499
        %v501 = vrcp.pop %v430
        %v502 = vmul.f32 1.0, %v501
        %v503 = vrcp.pop %v431
        %v504 = vmul.f32 1.0, %v503
        %v505 = vrcp.pop %v432
        %v506 = vmul.f32 1.0, %v505
        %v507 = vrcp.pop %v433
        %v508 = vmul.f32 1.0, %v507
        %v509 = vrcp.pop %v434
        %v510 = vmul.f32 1.0, %v509
        %v511 = vrcp.pop %v435
        %v512 = vmul.f32 1.0, %v511
        %v513 = vrcp.pop %v436
        %v514 = vmul.f32 1.0, %v513
        %v515 = vrcp.pop %v437
        %v516 = vmul.f32 1.0, %v515
        %v517 = vrcp.pop %v438
        %v518 = vmul.f32 1.0, %v517
        %v519 = vrcp.pop %v439
        %v520 = vmul.f32 1.0, %v519
        %v521 = vrcp.pop %v440
        %v522 = vmul.f32 1.0, %v521
        %v523 = vrcp.pop %v441
        %v524 = vmul.f32 1.0, %v523
        %v525 = vrcp.pop %v442
        %v526 = vmul.f32 1.0, %v525
        %v527 = vrcp.pop %v443
        %v528 = vmul.f32 1.0, %v527
        %v529 = vrcp.pop %v444
        %v530 = vmul.f32 1.0, %v529
        %v531 = vrcp.pop %v445
        %v532 = vmul.f32 1.0, %v531
        %v533 = vrcp.pop %v446
        %v534 = vmul.f32 1.0, %v533
        %v535 = vrcp.pop %v447
        %v536 = vmul.f32 1.0, %v535
        %v537 = vrcp.pop %v448
        %v538 = vmul.f32 1.0, %v537
        %v539 = vrcp.pop %v449
        %v540 = vmul.f32 1.0, %v539
        %v541 = vrcp.pop %v450
        %v542 = vmul.f32 1.0, %v541
        %v543 = vrcp.pop %v451
        %v544 = vmul.f32 1.0, %v543
        %v545 = vrcp.pop %v452
        %v546 = vmul.f32 1.0, %v545
        %v547 = vrcp.pop %v453
        %v548 = vmul.f32 1.0, %v547
        %v549 = vrcp.pop %v454
        %v550 = vmul.f32 1.0, %v549
        %v551 = vrcp.pop %v455
        %v552 = vmul.f32 1.0, %v551
        %v553 = vrcp.pop %v456
        %v554 = vmul.f32 1.0, %v553
        %v555 = vrcp.pop %v457
        %v556 = vmul.f32 1.0, %v555
        %v557 = vrcp.pop %v458
        %v558 = vmul.f32 1.0, %v557
        %v559 = vrcp.pop %v459
        %v560 = vmul.f32 1.0, %v559
        %v561 = vrcp.pop %v460
        %v562 = vmul.f32 1.0, %v561
        %v563 = vrcp.pop %v461
        %v564 = vmul.f32 1.0, %v563
        %v565 = vrcp.pop %v462
        %v566 = vmul.f32 1.0, %v565
        %v567 = vrcp.pop %v463
        %v568 = vmul.f32 1.0, %v567
        %v569 = vrcp.pop %v464
        %v570 = vmul.f32 1.0, %v569
        %v571 = vrcp.pop %v465
        %v572 = vmul.f32 1.0, %v571
        %v573 = vrcp.pop %v466
        %v574 = vmul.f32 1.0, %v573
        %v575 = vrcp.pop %v467
        %v576 = vmul.f32 1.0, %v575
        %v577 = vrcp.pop %v468
        %v578 = vmul.f32 1.0, %v577
        %v579 = vrcp.pop %v469
        %v580 = vmul.f32 1.0, %v579
        %v581 = vrcp.pop %v470
        %v582 = vmul.f32 1.0, %v581
        %v583 = vrcp.pop %v471
        %v584 = vmul.f32 1.0, %v583
        %v585 = vrcp.pop %v472
        %v586 = vmul.f32 1.0, %v585
        %v587 = vrcp.pop %v473
        %v588 = vmul.f32 1.0, %v587
        %v589 = vrcp.pop %v474
        %v590 = vmul.f32 1.0, %v589
        %v591 = vrcp.pop %v475
        %v592 = vmul.f32 1.0, %v591
        %v593 = vrcp.pop %v476
        %v594 = vmul.f32 1.0, %v593
        %v595 = vrcp.pop %v477
        %v596 = vmul.f32 1.0, %v595
        %v597 = vrcp.pop %v478
        %v598 = vmul.f32 1.0, %v597
        %v599 = vrcp.pop %v479
        %v600 = vmul.f32 1.0, %v599
        %v601 = vrcp.pop %v480
        %v602 = vmul.f32 1.0, %v601
        %v603 = vrcp.pop %v481
        %v604 = vmul.f32 1.0, %v603
        %v605 = vrcp.pop %v482
        %v606 = vmul.f32 1.0, %v605
        %v607 = vrcp.pop %v483
        %v608 = vmul.f32 1.0, %v607
        %v609 = vrcp.pop %v484
        %v610 = vmul.f32 1.0, %v609
        %v611 = vrcp.pop %v485
        %v612 = vmul.f32 1.0, %v611
        %v613 = vrcp.pop %v486
        %v614 = vmul.f32 1.0, %v613
        %v615 = vld [vmem:[%s158] sm:$0xff]
        %v616 = vld [vmem:[%s158 + $0x8] sm:$0xff]
        %v617 = vld [vmem:[%s158 + $0x10] sm:$0xff]
        %v618 = vld [vmem:[%s158 + $0x18] sm:$0xff]
        %v619 = vld [vmem:[%s158 + $0x20] sm:$0xff]
        %v620 = vld [vmem:[%s158 + $0x28] sm:$0xff]
        %v621 = vld [vmem:[%s158 + $0x30] sm:$0xff]
        %v622 = vld [vmem:[%s158 + $0x38] sm:$0xff]
        %v623 = vld [vmem:[%s158 + $0x40] sm:$0xff]
        %v624 = vld [vmem:[%s158 + $0x48] sm:$0xff]
        %v625 = vld [vmem:[%s158 + $0x50] sm:$0xff]
        %v626 = vld [vmem:[%s158 + $0x58] sm:$0xff]
        %v627 = vld [vmem:[%s158 + $0x60] sm:$0xff]
        %v628 = vld [vmem:[%s158 + $0x68] sm:$0xff]
        %v629 = vld [vmem:[%s158 + $0x70] sm:$0xff]
        %v630 = vld [vmem:[%s158 + $0x78] sm:$0xff]
        %v631 = vld [vmem:[%s158 + $0x80] sm:$0xff]
        %v632 = vld [vmem:[%s158 + $0x88] sm:$0xff]
        %v633 = vld [vmem:[%s158 + $0x90] sm:$0xff]
        %v634 = vld [vmem:[%s158 + $0x98] sm:$0xff]
        %v635 = vld [vmem:[%s158 + $0xa0] sm:$0xff]
        %v636 = vld [vmem:[%s158 + $0xa8] sm:$0xff]
        %v637 = vld [vmem:[%s158 + $0xb0] sm:$0xff]
        %v638 = vld [vmem:[%s158 + $0xb8] sm:$0xff]
        %v639 = vld [vmem:[%s158 + $0xc0] sm:$0xff]
        %v640 = vld [vmem:[%s158 + $0xc8] sm:$0xff]
        %v641 = vld [vmem:[%s158 + $0xd0] sm:$0xff]
        %v642 = vld [vmem:[%s158 + $0xd8] sm:$0xff]
        %v643 = vld [vmem:[%s158 + $0xe0] sm:$0xff]
        %v644 = vld [vmem:[%s158 + $0xe8] sm:$0xff]
        %v645 = vld [vmem:[%s158 + $0xf0] sm:$0xff]
        %v646 = vld [vmem:[%s158 + $0xf8] sm:$0xff]
        %v647 = vld [vmem:[%s158 + $0x100] sm:$0xff]
        %v648 = vld [vmem:[%s158 + $0x108] sm:$0xff]
        %v649 = vld [vmem:[%s158 + $0x110] sm:$0xff]
        %v650 = vld [vmem:[%s158 + $0x118] sm:$0xff]
        %v651 = vld [vmem:[%s158 + $0x120] sm:$0xff]
        %v652 = vld [vmem:[%s158 + $0x128] sm:$0xff]
        %v653 = vld [vmem:[%s158 + $0x130] sm:$0xff]
        %v654 = vld [vmem:[%s158 + $0x138] sm:$0xff]
        %v655 = vld [vmem:[%s158 + $0x140] sm:$0xff]
        %v656 = vld [vmem:[%s158 + $0x148] sm:$0xff]
        %v657 = vld [vmem:[%s158 + $0x150] sm:$0xff]
        %v658 = vld [vmem:[%s158 + $0x158] sm:$0xff]
        %v659 = vld [vmem:[%s158 + $0x160] sm:$0xff]
        %v660 = vld [vmem:[%s158 + $0x168] sm:$0xff]
        %v661 = vld [vmem:[%s158 + $0x170] sm:$0xff]
        %v662 = vld [vmem:[%s158 + $0x178] sm:$0xff]
        %v663 = vld [vmem:[%s158 + $0x180] sm:$0xff]
        %v664 = vld [vmem:[%s158 + $0x188] sm:$0xff]
        %v665 = vld [vmem:[%s158 + $0x190] sm:$0xff]
        %v666 = vld [vmem:[%s158 + $0x198] sm:$0xff]
        %v667 = vld [vmem:[%s158 + $0x1a0] sm:$0xff]
        %v668 = vld [vmem:[%s158 + $0x1a8] sm:$0xff]
        %v669 = vld [vmem:[%s158 + $0x1b0] sm:$0xff]
        %v670 = vld [vmem:[%s158 + $0x1b8] sm:$0xff]
        %v671 = vld [vmem:[%s158 + $0x1c0] sm:$0xff]
        %v672 = vld [vmem:[%s158 + $0x1c8] sm:$0xff]
        %v673 = vld [vmem:[%s158 + $0x1d0] sm:$0xff]
        %v674 = vld [vmem:[%s158 + $0x1d8] sm:$0xff]
        %v675 = vld [vmem:[%s158 + $0x1e0] sm:$0xff]
        %v676 = vld [vmem:[%s158 + $0x1e8] sm:$0xff]
        %v677 = vld [vmem:[%s158 + $0x1f0] sm:$0xff]
        %v678 = vld [vmem:[%s158 + $0x1f8] sm:$0xff]
        %680 = vset.pattern.permute.xlu0 0
        %681 = vperm.xlu0 %680, %v488
        %v682 = vpop.permute.xlu0 %681
        %685 = vset.pattern.permute.xlu0 0
        %686 = vperm.xlu0 %685, %v490
        %v687 = vpop.permute.xlu0 %686
        %690 = vset.pattern.permute.xlu0 0
        %691 = vperm.xlu0 %690, %v492
        %v692 = vpop.permute.xlu0 %691
        %695 = vset.pattern.permute.xlu0 0
        %696 = vperm.xlu0 %695, %v494
        %v697 = vpop.permute.xlu0 %696
        %700 = vset.pattern.permute.xlu0 0
        %701 = vperm.xlu0 %700, %v496
        %v702 = vpop.permute.xlu0 %701
        %705 = vset.pattern.permute.xlu0 0
        %706 = vperm.xlu0 %705, %v498
        %v707 = vpop.permute.xlu0 %706
        %710 = vset.pattern.permute.xlu0 0
        %711 = vperm.xlu0 %710, %v500
        %v712 = vpop.permute.xlu0 %711
        %715 = vset.pattern.permute.xlu0 0
        %716 = vperm.xlu0 %715, %v502
        %v717 = vpop.permute.xlu0 %716
        %720 = vset.pattern.permute.xlu0 0
        %721 = vperm.xlu0 %720, %v504
        %v722 = vpop.permute.xlu0 %721
        %725 = vset.pattern.permute.xlu0 0
        %726 = vperm.xlu0 %725, %v506
        %v727 = vpop.permute.xlu0 %726
        %730 = vset.pattern.permute.xlu0 0
        %731 = vperm.xlu0 %730, %v508
        %v732 = vpop.permute.xlu0 %731
        %735 = vset.pattern.permute.xlu0 0
        %736 = vperm.xlu0 %735, %v510
        %v737 = vpop.permute.xlu0 %736
        %740 = vset.pattern.permute.xlu0 0
        %741 = vperm.xlu0 %740, %v512
        %v742 = vpop.permute.xlu0 %741
        %745 = vset.pattern.permute.xlu0 0
        %746 = vperm.xlu0 %745, %v514
        %v747 = vpop.permute.xlu0 %746
        %750 = vset.pattern.permute.xlu0 0
        %751 = vperm.xlu0 %750, %v516
        %v752 = vpop.permute.xlu0 %751
        %755 = vset.pattern.permute.xlu0 0
        %756 = vperm.xlu0 %755, %v518
        %v757 = vpop.permute.xlu0 %756
        %760 = vset.pattern.permute.xlu0 0
        %761 = vperm.xlu0 %760, %v520
        %v762 = vpop.permute.xlu0 %761
        %765 = vset.pattern.permute.xlu0 0
        %766 = vperm.xlu0 %765, %v522
        %v767 = vpop.permute.xlu0 %766
        %770 = vset.pattern.permute.xlu0 0
        %771 = vperm.xlu0 %770, %v524
        %v772 = vpop.permute.xlu0 %771
        %775 = vset.pattern.permute.xlu0 0
        %776 = vperm.xlu0 %775, %v526
        %v777 = vpop.permute.xlu0 %776
        %780 = vset.pattern.permute.xlu0 0
        %781 = vperm.xlu0 %780, %v528
        %v782 = vpop.permute.xlu0 %781
        %785 = vset.pattern.permute.xlu0 0
        %786 = vperm.xlu0 %785, %v530
        %v787 = vpop.permute.xlu0 %786
        %790 = vset.pattern.permute.xlu0 0
        %791 = vperm.xlu0 %790, %v532
        %v792 = vpop.permute.xlu0 %791
        %795 = vset.pattern.permute.xlu0 0
        %796 = vperm.xlu0 %795, %v534
        %v797 = vpop.permute.xlu0 %796
        %800 = vset.pattern.permute.xlu0 0
        %801 = vperm.xlu0 %800, %v536
        %v802 = vpop.permute.xlu0 %801
        %805 = vset.pattern.permute.xlu0 0
        %806 = vperm.xlu0 %805, %v538
        %v807 = vpop.permute.xlu0 %806
        %810 = vset.pattern.permute.xlu0 0
        %811 = vperm.xlu0 %810, %v540
        %v812 = vpop.permute.xlu0 %811
        %815 = vset.pattern.permute.xlu0 0
        %816 = vperm.xlu0 %815, %v542
        %v817 = vpop.permute.xlu0 %816
        %820 = vset.pattern.permute.xlu0 0
        %821 = vperm.xlu0 %820, %v544
        %v822 = vpop.permute.xlu0 %821
        %825 = vset.pattern.permute.xlu0 0
        %826 = vperm.xlu0 %825, %v546
        %v827 = vpop.permute.xlu0 %826
        %830 = vset.pattern.permute.xlu0 0
        %831 = vperm.xlu0 %830, %v548
        %v832 = vpop.permute.xlu0 %831
        %835 = vset.pattern.permute.xlu0 0
        %836 = vperm.xlu0 %835, %v550
        %v837 = vpop.permute.xlu0 %836
        %840 = vset.pattern.permute.xlu0 0
        %841 = vperm.xlu0 %840, %v552
        %v842 = vpop.permute.xlu0 %841
        %845 = vset.pattern.permute.xlu0 0
        %846 = vperm.xlu0 %845, %v554
        %v847 = vpop.permute.xlu0 %846
        %850 = vset.pattern.permute.xlu0 0
        %851 = vperm.xlu0 %850, %v556
        %v852 = vpop.permute.xlu0 %851
        %855 = vset.pattern.permute.xlu0 0
        %856 = vperm.xlu0 %855, %v558
        %v857 = vpop.permute.xlu0 %856
        %860 = vset.pattern.permute.xlu0 0
        %861 = vperm.xlu0 %860, %v560
        %v862 = vpop.permute.xlu0 %861
        %865 = vset.pattern.permute.xlu0 0
        %866 = vperm.xlu0 %865, %v562
        %v867 = vpop.permute.xlu0 %866
        %870 = vset.pattern.permute.xlu0 0
        %871 = vperm.xlu0 %870, %v564
        %v872 = vpop.permute.xlu0 %871
        %875 = vset.pattern.permute.xlu0 0
        %876 = vperm.xlu0 %875, %v566
        %v877 = vpop.permute.xlu0 %876
        %880 = vset.pattern.permute.xlu0 0
        %881 = vperm.xlu0 %880, %v568
        %v882 = vpop.permute.xlu0 %881
        %885 = vset.pattern.permute.xlu0 0
        %886 = vperm.xlu0 %885, %v570
        %v887 = vpop.permute.xlu0 %886
        %890 = vset.pattern.permute.xlu0 0
        %891 = vperm.xlu0 %890, %v572
        %v892 = vpop.permute.xlu0 %891
        %895 = vset.pattern.permute.xlu0 0
        %896 = vperm.xlu0 %895, %v574
        %v897 = vpop.permute.xlu0 %896
        %900 = vset.pattern.permute.xlu0 0
        %901 = vperm.xlu0 %900, %v576
        %v902 = vpop.permute.xlu0 %901
        %905 = vset.pattern.permute.xlu0 0
        %906 = vperm.xlu0 %905, %v578
        %v907 = vpop.permute.xlu0 %906
        %910 = vset.pattern.permute.xlu0 0
        %911 = vperm.xlu0 %910, %v580
        %v912 = vpop.permute.xlu0 %911
        %915 = vset.pattern.permute.xlu0 0
        %916 = vperm.xlu0 %915, %v582
        %v917 = vpop.permute.xlu0 %916
        %920 = vset.pattern.permute.xlu0 0
        %921 = vperm.xlu0 %920, %v584
        %v922 = vpop.permute.xlu0 %921
        %925 = vset.pattern.permute.xlu0 0
        %926 = vperm.xlu0 %925, %v586
        %v927 = vpop.permute.xlu0 %926
        %930 = vset.pattern.permute.xlu0 0
        %931 = vperm.xlu0 %930, %v588
        %v932 = vpop.permute.xlu0 %931
        %935 = vset.pattern.permute.xlu0 0
        %936 = vperm.xlu0 %935, %v590
        %v937 = vpop.permute.xlu0 %936
        %940 = vset.pattern.permute.xlu0 0
        %941 = vperm.xlu0 %940, %v592
        %v942 = vpop.permute.xlu0 %941
        %945 = vset.pattern.permute.xlu0 0
        %946 = vperm.xlu0 %945, %v594
        %v947 = vpop.permute.xlu0 %946
        %950 = vset.pattern.permute.xlu0 0
        %951 = vperm.xlu0 %950, %v596
        %v952 = vpop.permute.xlu0 %951
        %955 = vset.pattern.permute.xlu0 0
        %956 = vperm.xlu0 %955, %v598
        %v957 = vpop.permute.xlu0 %956
        %960 = vset.pattern.permute.xlu0 0
        %961 = vperm.xlu0 %960, %v600
        %v962 = vpop.permute.xlu0 %961
        %965 = vset.pattern.permute.xlu0 0
        %966 = vperm.xlu0 %965, %v602
        %v967 = vpop.permute.xlu0 %966
        %970 = vset.pattern.permute.xlu0 0
        %971 = vperm.xlu0 %970, %v604
        %v972 = vpop.permute.xlu0 %971
        %975 = vset.pattern.permute.xlu0 0
        %976 = vperm.xlu0 %975, %v606
        %v977 = vpop.permute.xlu0 %976
        %980 = vset.pattern.permute.xlu0 0
        %981 = vperm.xlu0 %980, %v608
        %v982 = vpop.permute.xlu0 %981
        %985 = vset.pattern.permute.xlu0 0
        %986 = vperm.xlu0 %985, %v610
        %v987 = vpop.permute.xlu0 %986
        %990 = vset.pattern.permute.xlu0 0
        %991 = vperm.xlu0 %990, %v612
        %v992 = vpop.permute.xlu0 %991
        %995 = vset.pattern.permute.xlu0 0
        %996 = vperm.xlu0 %995, %v614
        %v997 = vpop.permute.xlu0 %996
        %v999 = vmul.f32 %v615, %v682
        %v1000 = vmul.f32 %v616, %v687
        %v1001 = vmul.f32 %v617, %v692
        %v1002 = vmul.f32 %v618, %v697
        %v1003 = vmul.f32 %v619, %v702
        %v1004 = vmul.f32 %v620, %v707
        %v1005 = vmul.f32 %v621, %v712
        %v1006 = vmul.f32 %v622, %v717
        %v1007 = vmul.f32 %v623, %v722
        %v1008 = vmul.f32 %v624, %v727
        %v1009 = vmul.f32 %v625, %v732
        %v1010 = vmul.f32 %v626, %v737
        %v1011 = vmul.f32 %v627, %v742
        %v1012 = vmul.f32 %v628, %v747
        %v1013 = vmul.f32 %v629, %v752
        %v1014 = vmul.f32 %v630, %v757
        %v1015 = vmul.f32 %v631, %v762
        %v1016 = vmul.f32 %v632, %v767
        %v1017 = vmul.f32 %v633, %v772
        %v1018 = vmul.f32 %v634, %v777
        %v1019 = vmul.f32 %v635, %v782
        %v1020 = vmul.f32 %v636, %v787
        %v1021 = vmul.f32 %v637, %v792
        %v1022 = vmul.f32 %v638, %v797
        %v1023 = vmul.f32 %v639, %v802
        %v1024 = vmul.f32 %v640, %v807
        %v1025 = vmul.f32 %v641, %v812
        %v1026 = vmul.f32 %v642, %v817
        %v1027 = vmul.f32 %v643, %v822
        %v1028 = vmul.f32 %v644, %v827
        %v1029 = vmul.f32 %v645, %v832
        %v1030 = vmul.f32 %v646, %v837
        %v1031 = vmul.f32 %v647, %v842
        %v1032 = vmul.f32 %v648, %v847
        %v1033 = vmul.f32 %v649, %v852
        %v1034 = vmul.f32 %v650, %v857
        %v1035 = vmul.f32 %v651, %v862
        %v1036 = vmul.f32 %v652, %v867
        %v1037 = vmul.f32 %v653, %v872
        %v1038 = vmul.f32 %v654, %v877
        %v1039 = vmul.f32 %v655, %v882
        %v1040 = vmul.f32 %v656, %v887
        %v1041 = vmul.f32 %v657, %v892
        %v1042 = vmul.f32 %v658, %v897
        %v1043 = vmul.f32 %v659, %v902
        %v1044 = vmul.f32 %v660, %v907
        %v1045 = vmul.f32 %v661, %v912
        %v1046 = vmul.f32 %v662, %v917
        %v1047 = vmul.f32 %v663, %v922
        %v1048 = vmul.f32 %v664, %v927
        %v1049 = vmul.f32 %v665, %v932
        %v1050 = vmul.f32 %v666, %v937
        %v1051 = vmul.f32 %v667, %v942
        %v1052 = vmul.f32 %v668, %v947
        %v1053 = vmul.f32 %v669, %v952
        %v1054 = vmul.f32 %v670, %v957
        %v1055 = vmul.f32 %v671, %v962
        %v1056 = vmul.f32 %v672, %v967
        %v1057 = vmul.f32 %v673, %v972
        %v1058 = vmul.f32 %v674, %v977
        %v1059 = vmul.f32 %v675, %v982
        %v1060 = vmul.f32 %v676, %v987
        %v1061 = vmul.f32 %v677, %v992
        %v1062 = vmul.f32 %v678, %v997
        %1063 = vst [vmem:[%s153] sm:$0xff] %v999
        %1064 = vst [vmem:[%s153 + $0x8] sm:$0xff] %v1000
        %1065 = vst [vmem:[%s153 + $0x10] sm:$0xff] %v1001
        %1066 = vst [vmem:[%s153 + $0x18] sm:$0xff] %v1002
        %1067 = vst [vmem:[%s153 + $0x20] sm:$0xff] %v1003
        %1068 = vst [vmem:[%s153 + $0x28] sm:$0xff] %v1004
        %1069 = vst [vmem:[%s153 + $0x30] sm:$0xff] %v1005
        %1070 = vst [vmem:[%s153 + $0x38] sm:$0xff] %v1006
        %1071 = vst [vmem:[%s153 + $0x40] sm:$0xff] %v1007
        %1072 = vst [vmem:[%s153 + $0x48] sm:$0xff] %v1008
        %1073 = vst [vmem:[%s153 + $0x50] sm:$0xff] %v1009
        %1074 = vst [vmem:[%s153 + $0x58] sm:$0xff] %v1010
        %1075 = vst [vmem:[%s153 + $0x60] sm:$0xff] %v1011
        %1076 = vst [vmem:[%s153 + $0x68] sm:$0xff] %v1012
        %1077 = vst [vmem:[%s153 + $0x70] sm:$0xff] %v1013
        %1078 = vst [vmem:[%s153 + $0x78] sm:$0xff] %v1014
        %1079 = vst [vmem:[%s153 + $0x80] sm:$0xff] %v1015
        %1080 = vst [vmem:[%s153 + $0x88] sm:$0xff] %v1016
        %1081 = vst [vmem:[%s153 + $0x90] sm:$0xff] %v1017
        %1082 = vst [vmem:[%s153 + $0x98] sm:$0xff] %v1018
        %1083 = vst [vmem:[%s153 + $0xa0] sm:$0xff] %v1019
        %1084 = vst [vmem:[%s153 + $0xa8] sm:$0xff] %v1020
        %1085 = vst [vmem:[%s153 + $0xb0] sm:$0xff] %v1021
        %1086 = vst [vmem:[%s153 + $0xb8] sm:$0xff] %v1022
        %1087 = vst [vmem:[%s153 + $0xc0] sm:$0xff] %v1023
        %1088 = vst [vmem:[%s153 + $0xc8] sm:$0xff] %v1024
        %1089 = vst [vmem:[%s153 + $0xd0] sm:$0xff] %v1025
        %1090 = vst [vmem:[%s153 + $0xd8] sm:$0xff] %v1026
        %1091 = vst [vmem:[%s153 + $0xe0] sm:$0xff] %v1027
        %1092 = vst [vmem:[%s153 + $0xe8] sm:$0xff] %v1028
        %1093 = vst [vmem:[%s153 + $0xf0] sm:$0xff] %v1029
        %1094 = vst [vmem:[%s153 + $0xf8] sm:$0xff] %v1030
        %1095 = vst [vmem:[%s153 + $0x100] sm:$0xff] %v1031
        %1096 = vst [vmem:[%s153 + $0x108] sm:$0xff] %v1032
        %1097 = vst [vmem:[%s153 + $0x110] sm:$0xff] %v1033
        %1098 = vst [vmem:[%s153 + $0x118] sm:$0xff] %v1034
        %1099 = vst [vmem:[%s153 + $0x120] sm:$0xff] %v1035
        %1100 = vst [vmem:[%s153 + $0x128] sm:$0xff] %v1036
        %1101 = vst [vmem:[%s153 + $0x130] sm:$0xff] %v1037
        %1102 = vst [vmem:[%s153 + $0x138] sm:$0xff] %v1038
        %1103 = vst [vmem:[%s153 + $0x140] sm:$0xff] %v1039
        %1104 = vst [vmem:[%s153 + $0x148] sm:$0xff] %v1040
        %1105 = vst [vmem:[%s153 + $0x150] sm:$0xff] %v1041
        %1106 = vst [vmem:[%s153 + $0x158] sm:$0xff] %v1042
        %1107 = vst [vmem:[%s153 + $0x160] sm:$0xff] %v1043
        %1108 = vst [vmem:[%s153 + $0x168] sm:$0xff] %v1044
        %1109 = vst [vmem:[%s153 + $0x170] sm:$0xff] %v1045
        %1110 = vst [vmem:[%s153 + $0x178] sm:$0xff] %v1046
        %1111 = vst [vmem:[%s153 + $0x180] sm:$0xff] %v1047
        %1112 = vst [vmem:[%s153 + $0x188] sm:$0xff] %v1048
        %1113 = vst [vmem:[%s153 + $0x190] sm:$0xff] %v1049
        %1114 = vst [vmem:[%s153 + $0x198] sm:$0xff] %v1050
        %1115 = vst [vmem:[%s153 + $0x1a0] sm:$0xff] %v1051
        %1116 = vst [vmem:[%s153 + $0x1a8] sm:$0xff] %v1052
        %1117 = vst [vmem:[%s153 + $0x1b0] sm:$0xff] %v1053
        %1118 = vst [vmem:[%s153 + $0x1b8] sm:$0xff] %v1054
        %1119 = vst [vmem:[%s153 + $0x1c0] sm:$0xff] %v1055
        %1120 = vst [vmem:[%s153 + $0x1c8] sm:$0xff] %v1056
        %1121 = vst [vmem:[%s153 + $0x1d0] sm:$0xff] %v1057
        %1122 = vst [vmem:[%s153 + $0x1d8] sm:$0xff] %v1058
        %1123 = vst [vmem:[%s153 + $0x1e0] sm:$0xff] %v1059
        %1124 = vst [vmem:[%s153 + $0x1e8] sm:$0xff] %v1060
        %1125 = vst [vmem:[%s153 + $0x1f0] sm:$0xff] %v1061
        %1126 = vst [vmem:[%s153 + $0x1f8] sm:$0xff] %v1062
        %s1127 = sand.u32 %s76, 1
        %s1128 = scalar_lea.sflag [#allocation3], %s1127
        %s1129 = sand.u32 %s76, 1
        %s1130 = smul.addr %s1129, 512
        %s1131 = scalar_lea.vmem [#allocation2], %s1130
        // Predicated region
        $region29: #{tpu_custom_call.1} parent=27 // pred_check
          %p1132 = pneg %p86
        $region30: #{tpu_custom_call.1} parent=27 // pred_check_branch
          %1134 = sbr.rel (%p1132) target = $region32
        $region31: #{tpu_custom_call.1} parent=27 // pred_region
          %s1135 = smul.u32 64, %s16
          %s1137 = ssub.s32 8192, 8192
          %1138 = vsyncadd %s1128, %s1137
          %s1139 = smul.addr %s1135, 128
          %s1140 = scalar_lea.hbm %s2, %s1139
          %s1141 = sshll.u32 %s1131, 4
          %s1142 = int_to_ptr.vmem [resolvable:$true] %s1141
          %1147 = dma.vmem_to_hbm [thread:$0]  %s1142, 8192, %s1140, %s1128, 128, 128, 8
        $region32: #{tpu_custom_call.1} parent=27 // pred_fallthru
          _
      $region28: #{tpu_custom_call.1} parent=5 // pred_fallthru
        _
      %p1148 = scmp.le.s32.totalorder 2, %s11
      // Predicated region
      $region33: #{tpu_custom_call.1} parent=5 // pred_check
        %p1149 = pneg %p1148
      $region34: #{tpu_custom_call.1} parent=5 // pred_check_branch
        %1151 = sbr.rel (%p1149) target = $region36
      $region35: #{tpu_custom_call.1} parent=5 // pred_region
        %s1152 = ssub.s32 %s11, 2
        // Predicated region
        $region37: #{tpu_custom_call.1} parent=35 // pred_check
          %p1153 = pneg %p92
        $region38: #{tpu_custom_call.1} parent=35 // pred_check_branch
          %1155 = sbr.rel (%p1153) target = $region40
        $region39: #{tpu_custom_call.1} parent=35 // pred_region
          %s1156 = sand.u32 %s77, 1
          %s1157 = scalar_lea.sflag [#allocation3], %s1156
          %s1158 = sand.u32 %s77, 1
          %s1159 = smul.addr %s1158, 512
          %s1160 = scalar_lea.vmem [#allocation2], %s1159
          %1161 = dma.done %s1157, 8192
        $region40: #{tpu_custom_call.1} parent=35 // pred_fallthru
          _
      $region36: #{tpu_custom_call.1} parent=5 // pred_fallthru
        _
    $region6: #{tpu_custom_call.1} parent=1 // loop_footer
      %s15 = sadd.s32 1, %s11
    $region7: #{tpu_custom_call.1} parent=1 // loop_footer_branch
      %10 = sbr.rel target = $region3
    $region8: #{tpu_custom_call.1} parent=1 // loop_exit
      _
    %1162 = vsyncpa [#allocation3], 1
    %s1163 = scalar_lea.sflag [#allocation3], 1
    %1164 = vsyncpa %s1163, 1

</llo_original>
